<compile_context>
chip_gen: v6e
topology: v6e:2x2x1
jax: 0.10.0
libtpu: 0.0.40
codegen_flags: <defaults>
</compile_context>

<pallas_src>
import math
from typing import NamedTuple

import jax
import jax.numpy as jnp
from jax.experimental import pallas as pl
from jax.experimental.pallas import tpu as pltpu


_VMEM_LIMIT_BYTES = 48 * 1024 * 1024  # safe on v5e/v6e (128 MiB) and v7x (64 MiB)
_TINY_FLOP_CUTOFF = 1 << 18           # below this M*N*K, XLA fast path wins


def _round_up(x, m):
    return ((x + m - 1) // m) * m


def _sublane_multiple(dtype):
    itemsize = jnp.dtype(dtype).itemsize
    if itemsize >= 4:
        return 8
    if itemsize == 2:
        return 16
    return 32


def _kn_plan(K, N, tn, tk):
    """Tile plan for the weight dims (shared by prepare + call paths)."""
    tn = _round_up(tn, 128)
    tk = _round_up(tk, 128)
    if N <= tn:
        Np = _round_up(N, 128)   # lane-dense output stores even for small N
        tn_e = Np
    else:
        Np = _round_up(N, tn)
        tn_e = tn
    if K <= tk:
        Kp = K                   # full-extent K block: no per-call K-pad of x
        tk_e = K
    else:
        Kp = _round_up(K, tk)
        tk_e = tk
    return tn_e, tk_e, Np, Kp


def _m_plan(M, dtype, tm):
    sub = _sublane_multiple(dtype)
    tm = _round_up(tm, sub)
    if M <= tm:
        Mp = _round_up(M, sub)
        tm_e = Mp
    else:
        Mp = _round_up(M, tm)
        tm_e = tm
    return tm_e, Mp


# ---------------------------------------------------------------------------
# Kernels
# ---------------------------------------------------------------------------

def _linear_kernel_single_k(x_ref, w_ref, b_ref, o_ref):
    """2-D grid: the whole K dim fits one block -> no accumulator scratch."""
    o_ref[...] = (
        jnp.dot(x_ref[...], w_ref[...], preferred_element_type=jnp.float32)
        + b_ref[...].astype(jnp.float32)
    ).astype(o_ref.dtype)


def _linear_kernel_kred(x_ref, w_ref, b_ref, o_ref, acc_ref):
    """3-D grid with a K reduction axis (last, 'arbitrary')."""
    k = pl.program_id(2)

    @pl.when(k == 0)
    def _():
        # Seed the accumulator with the broadcast bias -> no add at the flush.
        acc_ref[...] = jnp.broadcast_to(
            b_ref[...].astype(jnp.float32), acc_ref.shape
        )

    acc_ref[...] += jnp.dot(
        x_ref[...], w_ref[...], preferred_element_type=jnp.float32
    )

    @pl.when(k == pl.num_programs(2) - 1)
    def _():
        o_ref[...] = acc_ref[...].astype(o_ref.dtype)


def _matmul_bias_pallas(x2, w2, b2, out_dtype, tm_e, tn_e, tk_e, Mp, Np, Kp):
    """x2:(Mp,Kp) @ w2:(Kp,Np) + b2:(1,Np), all already padded to the plan."""
    grid_k = Kp // tk_e

    if grid_k == 1:
        grid = (Mp // tm_e, Np // tn_e)
        in_specs = [
            pl.BlockSpec((tm_e, tk_e), lambda i, j: (i, 0)),
            pl.BlockSpec((tk_e, tn_e), lambda i, j: (0, j)),
            pl.BlockSpec((1, tn_e), lambda i, j: (0, j)),
        ]
        out_specs = pl.BlockSpec((tm_e, tn_e), lambda i, j: (i, j))
        kernel = _linear_kernel_single_k
        scratch = []
        dim_sem = ("parallel", "parallel")
    else:
        grid = (Mp // tm_e, Np // tn_e, grid_k)
        in_specs = [
            pl.BlockSpec((tm_e, tk_e), lambda i, j, k: (i, k)),
            pl.BlockSpec((tk_e, tn_e), lambda i, j, k: (k, j)),
            pl.BlockSpec((1, tn_e), lambda i, j, k: (0, j)),
        ]
        out_specs = pl.BlockSpec((tm_e, tn_e), lambda i, j, k: (i, j))
        kernel = _linear_kernel_kred
        scratch = [pltpu.VMEM((tm_e, tn_e), jnp.float32)]
        dim_sem = ("parallel", "parallel", "arbitrary")

    return pl.pallas_call(
        kernel,
        out_shape=jax.ShapeDtypeStruct((Mp, Np), out_dtype),
        grid_spec=pltpu.PrefetchScalarGridSpec(
            num_scalar_prefetch=0,
            grid=grid,
            in_specs=in_specs,
            out_specs=out_specs,
            scratch_shapes=scratch,
        ),
        compiler_params=pltpu.CompilerParams(
            dimension_semantics=dim_sem,
            vmem_limit_bytes=_VMEM_LIMIT_BYTES,
        ),
    )(x2, w2, b2)


# ---------------------------------------------------------------------------
# Parameter preparation (one-time, out of the hot path)
# ---------------------------------------------------------------------------

class LinearParams(NamedTuple):
    w_t: jnp.ndarray      # (Kp, Np) pre-transposed + pre-padded weight
    bias: jnp.ndarray     # (1, Np)  pre-padded bias (f32)
    in_features: int
    out_features: int
    tn: int
    tk: int


def prepare_linear_params(weight, bias, *, compute_dtype=None, tn=1024, tk=512):
    """One-time conversion from PyTorch layout (out, in).

    Transposes to (in, out), optionally casts to a compute dtype (e.g.
    jnp.bfloat16 for the MXU-native path), and pads K/N to the tile plan so the
    hot path never re-pads the weight or bias per call.
    """
    w_t = jnp.asarray(weight).T            # (K, N)
    if compute_dtype is not None:
        w_t = w_t.astype(compute_dtype)
    b = jnp.asarray(bias)
    K, N = w_t.shape

    _, _, Np, Kp = _kn_plan(K, N, tn, tk)
    if Kp != K or Np != N:
        w_t = jnp.pad(w_t, ((0, Kp - K), (0, Np - N)))
    b2 = b.reshape(1, N).astype(jnp.float32)
    if Np != N:
        b2 = jnp.pad(b2, ((0, 0), (0, Np - N)))
    return LinearParams(w_t=w_t, bias=b2, in_features=K, out_features=N,
                        tn=tn, tk=tk)


# ---------------------------------------------------------------------------
# Forward entry points
# ---------------------------------------------------------------------------

def linear_layer_params(x, params: LinearParams, *, tm=512, force_pallas=False):
    """Hot-path entry: y = x @ W.T + b with pre-prepared (padded) params."""
    *lead, K = x.shape
    assert K == params.in_features, "in_features mismatch"
    N = params.out_features
    M = int(math.prod(lead)) if lead else 1
    x2 = x.reshape(M, K)
    out_dtype = x.dtype

    # Tiny-shape fast path: pad/launch/slice fixed cost would dominate.
    if not force_pallas and (M * N * K) <= _TINY_FLOP_CUTOFF:
        y = (
            jnp.dot(x2.astype(params.w_t.dtype), params.w_t[:K, :N],
                    preferred_element_type=jnp.float32)
            + params.bias[0, :N]
        ).astype(out_dtype)
        return y.reshape(*lead, N)

    # Feed the MXU in the weight's compute dtype (e.g. bf16), accumulate f32.
    if params.w_t.dtype != x2.dtype:
        x2 = x2.astype(params.w_t.dtype)

    tn_e, tk_e, Np, Kp = _kn_plan(K, N, params.tn, params.tk)
    tm_e, Mp = _m_plan(M, params.w_t.dtype, tm)

    if Mp != M or Kp != K:
        x2 = jnp.pad(x2, ((0, Mp - M), (0, Kp - K)))

    out = _matmul_bias_pallas(x2, params.w_t, params.bias, out_dtype,
                              tm_e, tn_e, tk_e, Mp, Np, Kp)

    y = out if (Mp == M and Np == N) else out[:M, :N]
    return y.reshape(*lead, N)


def linear_layer_wt(x, w_t, bias, *, tm=512, tn=1024, tk=512, force_pallas=False):
    """y = x @ w_t + bias, with w_t already transposed to (in, out).

    Convenience entry; pads the weight per call. For hot loops prefer
    prepare_linear_params + linear_layer_params.
    """
    *lead, K = x.shape
    M = int(math.prod(lead)) if lead else 1
    x2 = x.reshape(M, K)
    Kw, N = w_t.shape
    assert Kw == K, "in_features mismatch"
    out_dtype = x.dtype

    if not force_pallas and (M * N * K) <= _TINY_FLOP_CUTOFF:
        y = (
            jnp.dot(x2.astype(w_t.dtype), w_t, preferred_element_type=jnp.float32)
            + bias.astype(jnp.float32)
        ).astype(out_dtype)
        return y.reshape(*lead, N)

    if w_t.dtype != x2.dtype:
        x2 = x2.astype(w_t.dtype)

    tn_e, tk_e, Np, Kp = _kn_plan(K, N, tn, tk)
    tm_e, Mp = _m_plan(M, w_t.dtype, tm)

    if Mp != M or Kp != K:
        x2 = jnp.pad(x2, ((0, Mp - M), (0, Kp - K)))
    w2 = w_t
    if Kp != K or Np != N:
        w2 = jnp.pad(w_t, ((0, Kp - K), (0, Np - N)))
    b2 = bias.reshape(1, N).astype(jnp.float32)
    if Np != N:
        b2 = jnp.pad(b2, ((0, 0), (0, Np - N)))

    out = _matmul_bias_pallas(x2, w2, b2, out_dtype, tm_e, tn_e, tk_e, Mp, Np, Kp)

    y = out if (Mp == M and Np == N) else out[:M, :N]
    return y.reshape(*lead, N)


def linear_layer(x, weight, bias, **kw):
    """Entry taking the PyTorch-layout weight (out_features, in_features)."""
    return linear_layer_wt(x, jnp.asarray(weight).T, jnp.asarray(bias), **kw)


def init_linear_params(key, in_features, out_features, dtype=jnp.float32):
    """nn.Linear-style init; returns weight in PyTorch layout (out, in) + bias."""
    k_w, k_b = jax.random.split(key)
    bound = 1.0 / math.sqrt(in_features)
    weight = jax.random.uniform(
        k_w, (out_features, in_features), dtype=dtype, minval=-bound, maxval=bound
    )
    bias = jax.random.uniform(
        k_b, (out_features,), dtype=dtype, minval=-bound, maxval=bound
    )
    return weight, bias


if __name__ == "__main__":
    key = jax.random.PRNGKey(0)
    k_x, k_p, k_x2, k_w2, k_b2 = jax.random.split(key, 5)

    # ---- 1) Module-sized case (batch=8, in=32, out=64), forced Pallas path ----
    batch, in_features, out_features = 8, 32, 64
    x = jax.random.normal(k_x, (batch, in_features), dtype=jnp.float32)
    weight, bias = init_linear_params(k_p, in_features, out_features)
    params = prepare_linear_params(weight, bias)

    y = jax.block_until_ready(linear_layer_params(x, params, force_pallas=True))
    y_ref = jnp.dot(x, weight.T, precision=jax.lax.Precision.HIGHEST) + bias
    assert y.shape == (batch, out_features)
    assert jnp.allclose(y, y_ref, atol=1e-5, rtol=1e-5), "mismatch (pallas small)"

    # ---- 2) Same shapes through the default tiny-shape fast path ----
    y_fast = jax.block_until_ready(linear_layer_params(x, params))
    assert jnp.allclose(y_fast, y_ref, atol=1e-5, rtol=1e-5), "mismatch (fast path)"

    # ---- 3) Larger case exercising M tiling, K reduction grid, padding, f32 acc ----
    M2, K2, N2 = 600, 1100, 300
    x2 = jax.random.normal(k_x2, (M2, K2), dtype=jnp.float32)
    w2 = jax.random.normal(k_w2, (N2, K2), dtype=jnp.float32) * 0.02  # (out, in)
    b2 = jax.random.normal(k_b2, (N2,), dtype=jnp.float32)
    params2 = prepare_linear_params(w2, b2)

    y2 = jax.block_until_ready(linear_layer_params(x2, params2))
    y2_ref = jnp.dot(x2, w2.T, precision=jax.lax.Precision.HIGHEST) + b2
    assert y2.shape == (M2, N2)
    assert jnp.allclose(y2, y2_ref, atol=1e-3, rtol=1e-3), "mismatch (tiled f32)"

    # ---- 4) bf16 compute path (MXU-native), f32 accumulation ----
    params2_bf16 = prepare_linear_params(w2, b2, compute_dtype=jnp.bfloat16)
    y2_bf16 = jax.block_until_ready(linear_layer_params(x2, params2_bf16))
    assert y2_bf16.shape == (M2, N2)
    assert jnp.allclose(y2_bf16, y2_ref, atol=5e-2, rtol=5e-2), "mismatch (tiled bf16)"

    print("KERNEL_OK")
</pallas_src>

<mosaic_0001>
module attributes {stable_mosaic.version = 11 : i64} {
  func.func @_linear_kernel_single_k(%arg0: i32, %arg1: i32, %arg2: memref<8x32xf32, #tpu.memory_space<vmem>>, %arg3: memref<32x128xf32, #tpu.memory_space<vmem>>, %arg4: memref<1x128xf32, #tpu.memory_space<vmem>>, %arg5: memref<8x128xf32, #tpu.memory_space<vmem>>) attributes {dimension_semantics = [#tpu.dimension_semantics<parallel>, #tpu.dimension_semantics<parallel>], iteration_bounds = array<i64: 1, 1>, scalar_prefetch = 0 : i64, scratch_operands = 0 : i64, tpu.core_type = #tpu.core_type<tc>, window_params = [{transform_indices = @transform_0, window_bounds = array<i64: 8, 32>}, {transform_indices = @transform_1, window_bounds = array<i64: 32, 128>}, {transform_indices = @transform_2, window_bounds = array<i64: 1, 128>}, {transform_indices = @transform_3, window_bounds = array<i64: 8, 128>}]} {
    %c0 = arith.constant 0 : index
    %c0_0 = arith.constant 0 : index
    %0 = vector.load %arg2[%c0, %c0_0] : memref<8x32xf32, #tpu.memory_space<vmem>>, vector<8x32xf32>
    %c0_1 = arith.constant 0 : index
    %c0_2 = arith.constant 0 : index
    %1 = vector.load %arg3[%c0_1, %c0_2] : memref<32x128xf32, #tpu.memory_space<vmem>>, vector<32x128xf32>
    %cst = arith.constant dense<0.000000e+00> : vector<8x128xf32>
    %2 = tpu.matmul %0, %1, %cst {dimension_numbers = #tpu.dot_dimension_numbers<[1], [0], [0], [1], [0, 0, 1, 1], [], []>} : vector<8x32xf32>, vector<32x128xf32>, vector<8x128xf32> -> vector<8x128xf32>
    %c0_3 = arith.constant 0 : index
    %c0_4 = arith.constant 0 : index
    %3 = vector.load %arg4[%c0_3, %c0_4] : memref<1x128xf32, #tpu.memory_space<vmem>>, vector<1x128xf32>
    %4 = vector.broadcast %3 : vector<1x128xf32> to vector<8x128xf32>
    %5 = arith.addf %2, %4 : vector<8x128xf32>
    %c0_5 = arith.constant 0 : index
    %c0_6 = arith.constant 0 : index
    %6 = vector.load %arg5[%c0_5, %c0_6] : memref<8x128xf32, #tpu.memory_space<vmem>>, vector<8x128xf32>
    tpu.vector_store %arg5[%c0_5, %c0_6], %5 {strides = array<i32>} : memref<8x128xf32, #tpu.memory_space<vmem>>, vector<8x128xf32>,
    return
  }
  func.func @transform_0(%arg0: i32, %arg1: i32) -> (i32, i32) {
    %c0_i32 = arith.constant 0 : i32
    %c0_i32_0 = arith.constant 0 : i32
    return %arg0, %c0_i32 : i32, i32
  }
  func.func @transform_1(%arg0: i32, %arg1: i32) -> (i32, i32) {
    %c0_i32 = arith.constant 0 : i32
    %c0_i32_0 = arith.constant 0 : i32
    return %c0_i32, %arg1 : i32, i32
  }
  func.func @transform_2(%arg0: i32, %arg1: i32) -> (i32, i32) {
    %c0_i32 = arith.constant 0 : i32
    %c0_i32_0 = arith.constant 0 : i32
    return %c0_i32, %arg1 : i32, i32
  }
  func.func @transform_3(%arg0: i32, %arg1: i32) -> (i32, i32) {
    %c0_i32 = arith.constant 0 : i32
    return %arg0, %arg1 : i32, i32
  }
}

</mosaic_0001>

<llo_original>
// kernel: tpu_custom_call.1
$region0: #{tpu_custom_call.1}
  #allocation0 [shape = 'u32[]', space=smem, size = 0x4, offset = 0x4, fixed_abs, tag = 'smem constant byte address 0x4 - core index']
  #allocation1 [shape = 'u32[144,128]{1,0:T(1,128)}', space=vmem, size = 0x12000, scoped, tag = 'internal scratch']
  %s0 = inlined_call_operand.hbm [shape: f32[8,32], index: 0, kind: input, shape index: {}]
  %s1 = inlined_call_operand.hbm [shape: f32[32,128], index: 1, kind: input, shape index: {}]
  %s2 = inlined_call_operand.vmem [shape: f32[1,128], index: 2, kind: input, shape index: {}]
  %s3 = inlined_call_operand.hbm [shape: f32[8,128], index: 3, kind: output, shape index: {}]
  %s4 = sld [smem:[#allocation0]]
  $region30: #{tpu_custom_call.1} parent=0
    _
  %s6 = ssub.s32 1, %s4
  %s7 = scalar_select 0, %s6, %s4
  $region1: #{tpu_custom_call.1} parent=0
    #allocation2 [shape = 'u8[4096]{0}', space=vmem, size = 0x1000, scoped, tag = 'input window, operand 0, single buffered']
    #allocation3 [shape = 's32[1]{0}', space=sflag, size = 0x4, scoped, tag = 'scoped memory for tpu_custom_call.1']
    #allocation4 [shape = 's32[1]{0}', space=sflag, size = 0x4, scoped, tag = 'scoped memory for tpu_custom_call.1']
    #allocation5 [shape = 'u8[16384]{0}', space=vmem, size = 0x4000, scoped, tag = 'input window, operand 1, single buffered']
    #allocation6 [shape = 's32[1]{0}', space=sflag, size = 0x4, scoped, tag = 'scoped memory for tpu_custom_call.1']
    #allocation7 [shape = 'u8[4096]{0}', space=vmem, size = 0x1000, scoped, tag = 'output window, operand 0, single buffered']
    %8 = vsyncpa [#allocation3], 0
    %9 = vsyncpa [#allocation6], 0
    %10 = vsyncpa [#allocation4], 0
    // Predicated region
    $region2: #{tpu_custom_call.1} parent=1 // pred_check
      _
    $region3: #{tpu_custom_call.1} parent=1 // pred_check_branch
      %12 = sbr.rel (0) target = $region5
    $region4: #{tpu_custom_call.1} parent=1 // pred_region
      %s14 = ssub.s32 128, 128
      %15 = vsyncadd [#allocation3], %s14
      %s17 = sshll.u32 [#allocation2], 4
      %s18 = int_to_ptr.vmem [resolvable:$true] %s17
      %20 = dma.hbm_to_vmem [thread:$0]  %s0, 128, %s18, [#allocation3]
    $region5: #{tpu_custom_call.1} parent=1 // pred_fallthru
      _
    // Predicated region
    $region6: #{tpu_custom_call.1} parent=1 // pred_check
      _
    $region7: #{tpu_custom_call.1} parent=1 // pred_check_branch
      %22 = sbr.rel (0) target = $region9
    $region8: #{tpu_custom_call.1} parent=1 // pred_region
      %s24 = ssub.s32 512, 512
      %25 = vsyncadd [#allocation6], %s24
      %s26 = sshll.u32 [#allocation5], 4
      %s27 = int_to_ptr.vmem [resolvable:$true] %s26
      %32 = dma.hbm_to_vmem [thread:$0]  %s1, 512, %s27, [#allocation6], 128, 128, 8
    $region9: #{tpu_custom_call.1} parent=1 // pred_fallthru
      _
    // Predicated region
    $region10: #{tpu_custom_call.1} parent=1 // pred_check
      _
    $region11: #{tpu_custom_call.1} parent=1 // pred_check_branch
      %34 = sbr.rel (0) target = $region13
    $region12: #{tpu_custom_call.1} parent=1 // pred_region
      _
    $region13: #{tpu_custom_call.1} parent=1 // pred_fallthru
      _
    // Predicated region
    $region14: #{tpu_custom_call.1} parent=1 // pred_check
      _
    $region15: #{tpu_custom_call.1} parent=1 // pred_check_branch
      %36 = sbr.rel (0) target = $region17
    $region16: #{tpu_custom_call.1} parent=1 // pred_region
      %37 = dma.done [#allocation3], 128
    $region17: #{tpu_custom_call.1} parent=1 // pred_fallthru
      _
    // Predicated region
    $region18: #{tpu_custom_call.1} parent=1 // pred_check
      _
    $region19: #{tpu_custom_call.1} parent=1 // pred_check_branch
      %39 = sbr.rel (0) target = $region21
    $region20: #{tpu_custom_call.1} parent=1 // pred_region
      %40 = dma.done [#allocation6], 512
    $region21: #{tpu_custom_call.1} parent=1 // pred_fallthru
      _
    %v41 = vld [vmem:[#allocation2] sm:$0xff]
    %v42 = vld [vmem:[#allocation5] sm:$0xff]
    %v43 = vld [vmem:[#allocation5 + $0x8] sm:$0xff]
    %v44 = vld [vmem:[#allocation5 + $0x10] sm:$0xff]
    %v45 = vld [vmem:[#allocation5 + $0x18] sm:$0xff]
    %v46 = vld [vmem:[%s2] sm:$0x1]
    %v48 = vlaneseq
    %v49 = vshrl.u32 %v48, 7
    %v50 = vsub.s32 0, %v49
    %v51 = vrot.slane %v46, %v50
    %vm53 = vcmask 261120
    %v55 = vsel %vm53, %v41, 0
    %57 = vmatprep.subr.mxu0 0.0
    %58 = vmatpush1.msra.mxu0 0.0
    %59 = vmatprep.subr.mxu0 0.0
    %60 = vmatpush1.msra.mxu0 0.0
    %61 = vmatprep.subr.mxu0 0.0
    %62 = vmatpush1.msra.mxu0 0.0
    %63 = vmatprep.subr.mxu0 0.0
    %64 = vmatpush1.msra.mxu0 0.0
    %65 = vmatprep.subr.mxu0 0.0
    %66 = vmatpush1.msra.mxu0 0.0
    %67 = vmatprep.subr.mxu0 0.0
    %68 = vmatpush1.msra.mxu0 0.0
    %69 = vmatprep.subr.mxu0 0.0
    %70 = vmatpush1.msra.mxu0 0.0
    %71 = vmatprep.subr.mxu0 0.0
    %72 = vmatpush1.msra.mxu0 0.0
    %73 = vmatprep.subr.mxu0 0.0
    %74 = vmatpush1.msra.mxu0 0.0
    %75 = vmatprep.subr.mxu0 0.0
    %76 = vmatpush1.msra.mxu0 0.0
    %77 = vmatprep.subr.mxu0 0.0
    %78 = vmatpush1.msra.mxu0 0.0
    %79 = vmatprep.subr.mxu0 0.0
    %80 = vmatpush1.msra.mxu0 0.0
    %81 = vmatprep.subr.mxu0 0.0
    %82 = vmatpush1.msra.mxu0 %v45
    %83 = vmatprep.subr.mxu0 0.0
    %84 = vmatpush1.msra.mxu0 %v44
    %85 = vmatprep.subr.mxu0 0.0
    %86 = vmatpush1.msra.mxu0 %v43
    %87 = vmatprep.subr.mxu0 0.0
    %88 = vmatpush1.msra.mxu0 %v42
    %89 = vmatprep.subr.mxu0 0.0
    %90 = vmatpush2.msra.mxu0 0.0
    %91 = vmatprep.subr.mxu0 0.0
    %92 = vmatpush2.msra.mxu0 0.0
    %93 = vmatprep.subr.mxu0 0.0
    %94 = vmatpush2.msra.mxu0 0.0
    %95 = vmatprep.subr.mxu0 0.0
    %96 = vmatpush2.msra.mxu0 0.0
    %97 = vmatprep.subr.mxu0 0.0
    %98 = vmatpush2.msra.mxu0 0.0
    %99 = vmatprep.subr.mxu0 0.0
    %100 = vmatpush2.msra.mxu0 0.0
    %101 = vmatprep.subr.mxu0 0.0
    %102 = vmatpush2.msra.mxu0 0.0
    %103 = vmatprep.subr.mxu0 0.0
    %104 = vmatpush2.msra.mxu0 0.0
    %105 = vmatprep.subr.mxu0 0.0
    %106 = vmatpush2.msra.mxu0 0.0
    %107 = vmatprep.subr.mxu0 0.0
    %108 = vmatpush2.msra.mxu0 0.0
    %109 = vmatprep.subr.mxu0 0.0
    %110 = vmatpush2.msra.mxu0 0.0
    %111 = vmatprep.subr.mxu0 0.0
    %112 = vmatpush2.msra.mxu0 0.0
    %113 = vmatprep.subr.mxu0 0.0
    %114 = vmatpush2.msra.mxu0 0.0
    %115 = vmatprep.subr.mxu0 0.0
    %116 = vmatpush2.msra.mxu0 0.0
    %117 = vmatprep.subr.mxu0 0.0
    %118 = vmatpush2.msra.mxu0 0.0
    %119 = vmatprep.subr.mxu0 0.0
    %120 = vmatpush2.msra.mxu0 0.0
    %121 = vmatprep.mubr.f32.mxu0 0.0
    %122 = vmatmul.mubr.f32.gmra.mxu0 %v55
    %v123 = vpop.f32.mrf.mxu0
    %v124 = vadd.f32 %v51, %v123
    %v125 = vpop.f32.mrf.mxu0
    %126 = vdwg.mxu0
    %127 = vst [vmem:[#allocation7] sm:$0xff] %v124
    // Predicated region
    $region22: #{tpu_custom_call.1} parent=1 // pred_check
      _
    $region23: #{tpu_custom_call.1} parent=1 // pred_check_branch
      %129 = sbr.rel (0) target = $region25
    $region24: #{tpu_custom_call.1} parent=1 // pred_region
      %s131 = ssub.s32 128, 128
      %132 = vsyncadd [#allocation4], %s131
      %s134 = sshll.u32 [#allocation7], 4
      %s135 = int_to_ptr.vmem [resolvable:$true] %s134
      %137 = dma.vmem_to_hbm [thread:$0]  %s135, 128, %s3, [#allocation4]
    $region25: #{tpu_custom_call.1} parent=1 // pred_fallthru
      _
    // Predicated region
    $region26: #{tpu_custom_call.1} parent=1 // pred_check
      _
    $region27: #{tpu_custom_call.1} parent=1 // pred_check_branch
      %139 = sbr.rel (0) target = $region29
    $region28: #{tpu_custom_call.1} parent=1 // pred_region
      %140 = dma.done [#allocation4], 128
    $region29: #{tpu_custom_call.1} parent=1 // pred_fallthru
      _
    %141 = vsyncpa [#allocation3], 1
    %142 = vsyncpa [#allocation6], 1
    %143 = vsyncpa [#allocation4], 1

</llo_original>
